<compile_context>
chip_gen: v7x
topology: tpu7x:2x2x1
jax: 0.10.0
libtpu: 0.0.40
codegen_flags: <defaults>
</compile_context>

<pallas_src>
import numpy as np
import jax
import jax.numpy as jnp
from jax import lax
from jax.experimental import pallas as pl
from jax.experimental.pallas import tpu as pltpu


def _sparse_embedding_kernel(off_ref, x_ref, tbl_ref, o_ref):
    # off_ref: SMEM (F,)      int32  (scalar prefetch)
    # x_ref:   VMEM (TB, F)   int32
    # tbl_ref: VMEM (V, D)    f32
    # o_ref:   VMEM (TB, F*D) f32    (lane-dense output block)
    TB, F = x_ref.shape
    V, D = tbl_ref.shape

    x = x_ref[...]                                       # (TB, F) int32
    tbl = tbl_ref[...]                                   # (V, D)  f32
    vocab_iota = lax.broadcasted_iota(jnp.int32, (TB, V), 1)

    embs = []
    for f in range(F):                                   # F is small & static
        idx_f = x[:, f:f + 1] + off_ref[f]               # (TB, 1) + SMEM scalar
        onehot = (vocab_iota == idx_f).astype(tbl.dtype)  # (TB, V)
        embs.append(jnp.dot(onehot, tbl,
                            preferred_element_type=jnp.float32))   # (TB, D)

    # Single lane-dense store of the whole (TB, F*D) tile.
    o_ref[...] = jnp.concatenate(embs, axis=-1).astype(o_ref.dtype)


def _round_up(v, m):
    return ((v + m - 1) // m) * m


def sparse_embedding(x, offsets, table, *, tile_b=None):
    """x: (N, F) int32, offsets: (F,) or (1, F) int32, table: (V, D) f32
    -> (N, F, D) f32."""
    N, F = x.shape
    V, D = table.shape
    offsets = jnp.asarray(offsets, jnp.int32).reshape(-1)
    assert offsets.shape == (F,)

    if tile_b is None:
        # Big tile for throughput, but keep >= 2 grid steps so v7x's second
        # TensorCore has work; sublane-aligned (multiple of 8).
        tile_b = min(256, max(8, _round_up(pl.cdiv(N, 2), 8)))
    tile_b = min(_round_up(tile_b, 8), _round_up(N, 8))
    grid = (pl.cdiv(N, tile_b),)

    out2d = pl.pallas_call(
        _sparse_embedding_kernel,
        out_shape=jax.ShapeDtypeStruct((N, F * D), table.dtype),
        grid_spec=pltpu.PrefetchScalarGridSpec(
            num_scalar_prefetch=1,              # offsets -> SMEM
            grid=grid,
            in_specs=[
                pl.BlockSpec((tile_b, F), lambda i, off: (i, 0)),   # indices
                pl.BlockSpec((V, D), lambda i, off: (0, 0)),        # table
            ],
            out_specs=pl.BlockSpec((tile_b, F * D), lambda i, off: (i, 0)),
        ),
        compiler_params=pltpu.CompilerParams(
            dimension_semantics=("parallel",),
            vmem_limit_bytes=32 * 1024 * 1024),
    )(offsets, x, table)
    return out2d.reshape(N, F, D)


if __name__ == "__main__":
    # Module hyper-parameters (small synthetic shapes).
    field_dims = (10, 7, 5, 3)
    emb_dim = 32
    vocab = int(sum(field_dims))                 # 25
    num_fields = len(field_dims)                 # 4
    N = 64                                       # batch size

    key = jax.random.PRNGKey(0)
    k_tbl, k_x = jax.random.split(key)

    # nn.Embedding weight with xavier_uniform_ init (gain = 1).
    bound = float(np.sqrt(6.0 / (vocab + emb_dim)))
    table = jax.random.uniform(k_tbl, (vocab, emb_dim), jnp.float32,
                               minval=-bound, maxval=bound)

    # offsets = (0, *cumsum(field_dims)[:-1])
    offsets = jnp.asarray(
        np.array((0, *np.cumsum(field_dims)[:-1]), dtype=np.int32))

    # x[:, f] is a valid index inside field f (0 <= x[:, f] < field_dims[f]).
    ks = jax.random.split(k_x, num_fields)
    cols = [jax.random.randint(ks[f], (N, 1), 0, field_dims[f], jnp.int32)
            for f in range(num_fields)]
    x = jnp.concatenate(cols, axis=1)            # (N, num_fields) int32

    # tile_b=16 -> 4 parallel grid steps (exercises pipelining / megacore).
    out = sparse_embedding(x, offsets, table, tile_b=16)
    out = jax.block_until_ready(out)

    # Pure-JAX reference check.
    ref = jnp.take(table, x + offsets[None, :], axis=0)   # (N, F, D)
    assert out.shape == (N, num_fields, emb_dim)
    np.testing.assert_allclose(np.asarray(out), np.asarray(ref),
                               rtol=1e-6, atol=1e-6)
    print("KERNEL_OK")
</pallas_src>

<mosaic_0001>
module attributes {stable_mosaic.version = 11 : i64} {
  func.func @_sparse_embedding_kernel(%arg0: i32, %arg1: memref<4xi32, #tpu.memory_space<smem>>, %arg2: memref<16x4xi32, #tpu.memory_space<vmem>>, %arg3: memref<25x32xf32, #tpu.memory_space<vmem>>, %arg4: memref<16x128xf32, #tpu.memory_space<vmem>>) attributes {dimension_semantics = [#tpu.dimension_semantics<parallel>], iteration_bounds = array<i64: 4>, scalar_prefetch = 1 : i64, scratch_operands = 0 : i64, tpu.core_type = #tpu.core_type<tc>, window_params = [{transform_indices = @transform_0, window_bounds = array<i64: 16, 4>}, {pipeline_mode = #tpu.pipeline_mode<synchronous>, transform_indices = @transform_1, window_bounds = array<i64: 25, 32>}, {transform_indices = @transform_2, window_bounds = array<i64: 16, 128>}]} {
    %c0 = arith.constant 0 : index
    %c0_0 = arith.constant 0 : index
    %0 = vector.load %arg2[%c0, %c0_0] : memref<16x4xi32, #tpu.memory_space<vmem>>, vector<16x4xi32>
    %c0_1 = arith.constant 0 : index
    %c0_2 = arith.constant 0 : index
    %1 = vector.load %arg3[%c0_1, %c0_2] : memref<25x32xf32, #tpu.memory_space<vmem>>, vector<25x32xf32>
    %2 = tpu.iota {dimensions = array<i32: 1>} : vector<16x25xi32>
    %3 = vector.extract_strided_slice %0 {offsets = [0, 0], sizes = [16, 1], strides = [1, 1]} : vector<16x4xi32> to vector<16x1xi32>
    %c0_3 = arith.constant 0 : index
    %4 = memref.load %arg1[%c0_3] : memref<4xi32, #tpu.memory_space<smem>>
    %5 = vector.broadcast %4 : i32 to vector<16x1xi32>
    %6 = arith.addi %3, %5 : vector<16x1xi32>
    %7 = vector.broadcast %6 : vector<16x1xi32> to vector<16x25xi32>
    %8 = arith.cmpi eq, %2, %7 : vector<16x25xi32>
    %9 = arith.extui %8 : vector<16x25xi1> to vector<16x25xi32>
    %10 = arith.sitofp %9 : vector<16x25xi32> to vector<16x25xf32>
    %cst = arith.constant dense<0.000000e+00> : vector<16x32xf32>
    %11 = tpu.matmul %10, %1, %cst {dimension_numbers = #tpu.dot_dimension_numbers<[1], [0], [0], [1], [0, 0, 1, 1], [], []>} : vector<16x25xf32>, vector<25x32xf32>, vector<16x32xf32> -> vector<16x32xf32>
    %12 = vector.extract_strided_slice %0 {offsets = [0, 1], sizes = [16, 1], strides = [1, 1]} : vector<16x4xi32> to vector<16x1xi32>
    %c1 = arith.constant 1 : index
    %13 = memref.load %arg1[%c1] : memref<4xi32, #tpu.memory_space<smem>>
    %14 = vector.broadcast %13 : i32 to vector<16x1xi32>
    %15 = arith.addi %12, %14 : vector<16x1xi32>
    %16 = vector.broadcast %15 : vector<16x1xi32> to vector<16x25xi32>
    %17 = arith.cmpi eq, %2, %16 : vector<16x25xi32>
    %18 = arith.extui %17 : vector<16x25xi1> to vector<16x25xi32>
    %19 = arith.sitofp %18 : vector<16x25xi32> to vector<16x25xf32>
    %cst_4 = arith.constant dense<0.000000e+00> : vector<16x32xf32>
    %20 = tpu.matmul %19, %1, %cst_4 {dimension_numbers = #tpu.dot_dimension_numbers<[1], [0], [0], [1], [0, 0, 1, 1], [], []>} : vector<16x25xf32>, vector<25x32xf32>, vector<16x32xf32> -> vector<16x32xf32>
    %21 = vector.extract_strided_slice %0 {offsets = [0, 2], sizes = [16, 1], strides = [1, 1]} : vector<16x4xi32> to vector<16x1xi32>
    %c2 = arith.constant 2 : index
    %22 = memref.load %arg1[%c2] : memref<4xi32, #tpu.memory_space<smem>>
    %23 = vector.broadcast %22 : i32 to vector<16x1xi32>
    %24 = arith.addi %21, %23 : vector<16x1xi32>
    %25 = vector.broadcast %24 : vector<16x1xi32> to vector<16x25xi32>
    %26 = arith.cmpi eq, %2, %25 : vector<16x25xi32>
    %27 = arith.extui %26 : vector<16x25xi1> to vector<16x25xi32>
    %28 = arith.sitofp %27 : vector<16x25xi32> to vector<16x25xf32>
    %cst_5 = arith.constant dense<0.000000e+00> : vector<16x32xf32>
    %29 = tpu.matmul %28, %1, %cst_5 {dimension_numbers = #tpu.dot_dimension_numbers<[1], [0], [0], [1], [0, 0, 1, 1], [], []>} : vector<16x25xf32>, vector<25x32xf32>, vector<16x32xf32> -> vector<16x32xf32>
    %30 = vector.extract_strided_slice %0 {offsets = [0, 3], sizes = [16, 1], strides = [1, 1]} : vector<16x4xi32> to vector<16x1xi32>
    %c3 = arith.constant 3 : index
    %31 = memref.load %arg1[%c3] : memref<4xi32, #tpu.memory_space<smem>>
    %32 = vector.broadcast %31 : i32 to vector<16x1xi32>
    %33 = arith.addi %30, %32 : vector<16x1xi32>
    %34 = vector.broadcast %33 : vector<16x1xi32> to vector<16x25xi32>
    %35 = arith.cmpi eq, %2, %34 : vector<16x25xi32>
    %36 = arith.extui %35 : vector<16x25xi1> to vector<16x25xi32>
    %37 = arith.sitofp %36 : vector<16x25xi32> to vector<16x25xf32>
    %cst_6 = arith.constant dense<0.000000e+00> : vector<16x32xf32>
    %38 = tpu.matmul %37, %1, %cst_6 {dimension_numbers = #tpu.dot_dimension_numbers<[1], [0], [0], [1], [0, 0, 1, 1], [], []>} : vector<16x25xf32>, vector<25x32xf32>, vector<16x32xf32> -> vector<16x32xf32>
    %39 = tpu.concatenate %11, %20, %29, %38 in 1 : vector<16x32xf32>, vector<16x32xf32>, vector<16x32xf32>, vector<16x32xf32> -> vector<16x128xf32>
    %c0_7 = arith.constant 0 : index
    %c0_8 = arith.constant 0 : index
    %40 = vector.load %arg4[%c0_7, %c0_8] : memref<16x128xf32, #tpu.memory_space<vmem>>, vector<16x128xf32>
    tpu.vector_store %arg4[%c0_7, %c0_8], %39 {strides = array<i32>} : memref<16x128xf32, #tpu.memory_space<vmem>>, vector<16x128xf32>,
    return
  }
  func.func @transform_0(%arg0: i32, %arg1: memref<4xi32, #tpu.memory_space<smem>>) -> (i32, i32) {
    %c0_i32 = arith.constant 0 : i32
    %c0_i32_0 = arith.constant 0 : i32
    return %arg0, %c0_i32 : i32, i32
  }
  func.func @transform_1(%arg0: i32, %arg1: memref<4xi32, #tpu.memory_space<smem>>) -> (i32, i32) {
    %c0_i32 = arith.constant 0 : i32
    %c0_i32_0 = arith.constant 0 : i32
    %c0_i32_1 = arith.constant 0 : i32
    return %c0_i32, %c0_i32_0 : i32, i32
  }
  func.func @transform_2(%arg0: i32, %arg1: memref<4xi32, #tpu.memory_space<smem>>) -> (i32, i32) {
    %c0_i32 = arith.constant 0 : i32
    %c0_i32_0 = arith.constant 0 : i32
    return %arg0, %c0_i32 : i32, i32
  }
}

</mosaic_0001>

<llo_original>
// kernel: tpu_custom_call.1
$region0: #{tpu_custom_call.1}
  #allocation0 [shape = 'u32[]', space=smem, size = 0x4, offset = 0x4, fixed_abs, tag = 'smem constant byte address 0x4 - core index']
  #allocation1 [shape = 'u32[144,128]{1,0:T(1,128)}', space=vmem, size = 0x12000, scoped, tag = 'internal scratch']
  #allocation2 [shape = 's32[1]{0}', space=sflag, size = 0x4, scoped, tag = 'scoped memory for tpu_custom_call.1']
  #allocation3 [shape = 'u8[512]{0}', space=smem, size = 0x200, scoped, tag = 'prefetched SMEM operand 0']
  %s0 = inlined_call_operand.vmem [shape: s32[4], index: 0, kind: input, shape index: {}]
  %s1 = inlined_call_operand.vmem [shape: s32[64,4], index: 1, kind: input, shape index: {}]
  %s2 = inlined_call_operand.vmem [shape: f32[25,32], index: 2, kind: input, shape index: {}]
  %s3 = inlined_call_operand.hbm [shape: f32[64,128], index: 3, kind: output, shape index: {}]
  %s4 = sld [smem:[#allocation0]]
  $region41: #{tpu_custom_call.1} parent=0
    _
  %s6 = ssub.s32 1, %s4
  %s7 = scalar_select 0, %s6, %s4
  %s8 = sshll.u32 %s0, 4
  %s9 = int_to_ptr.vmem [resolvable:$true] %s8
  %11 = dma.vmem_to_smem %s9, 16, [#allocation3], [#allocation2]
  %12 = dma.done [#allocation2], 16
  %13 = sfence
  $region1: #{tpu_custom_call.1} parent=0
    #allocation4 [shape = 'u8[16384]{0}', space=vmem, size = 0x4000, scoped, tag = 'output window, operand 0']
    #allocation5 [shape = 's32[2]{0}', space=sflag, size = 0x8, scoped, tag = 'scoped memory for tpu_custom_call.1']
    %14 = vsyncpa [#allocation5], 0
    %s15 = scalar_lea.sflag [#allocation5], 1
    %16 = vsyncpa %s15, 0
    loop: start=0, step=1, limit=6
    $region2: #{tpu_custom_call.1} parent=1 // loop_pre_header
      _
    $region3: #{tpu_custom_call.1} parent=1 // loop_header
      %s18 = sphi 0, %s22
      %p19 = scmp.ge.s32.totalorder %s18, 6
      %s28 = sphi 0, %s30
      %s31 = sphi 0, %s28
      %s32 = sphi 0, %s31
      %s48 = sphi 0, %s32
      %s52 = sphi 0, %s52
      %s54 = sphi 0, %s52
      %s55 = sphi 0, %s54
      %s69 = sphi 0, %s55
      %s75 = sphi 0, %s77
      %s78 = sphi 0, %s75
      %s79 = sphi 0, %s78
      %s95 = sphi 0, %s79
    $region4: #{tpu_custom_call.1} parent=1 // loop_header_branch
      %21 = sbr.rel (%p19) target = $region8
    $region5: #{tpu_custom_call.1} parent=1 // loop_body
      %s23 = ssub.s32 %s18, 1
      %s24 = ssub.s32 %s18, 2
      %s25 = sadd.s32 %s18, 1
      %s26 = ssub.s32 %s18, %s25
      %p27 = scmp.eq.s32.totalorder %s26, 0
      %s29 = sadd.s32 %s28, 1
      %s30 = scalar_select %p27, %s28, %s29
      %p33 = pneg %p27
      %p34 = scmp.eq.s32.totalorder %s18, 3
      %p35 = por %p33, %p34
      %p36 = scmp.ne.s32.totalorder %s28, %s31
      %p37 = scmp.eq.s32.totalorder %s18, 0
      %p38 = por %p36, %p37
      %p39 = scmp.ne.s32.totalorder %s28, %s31
      %p40 = scmp.eq.s32.totalorder %s23, 3
      %p41 = por %p39, %p40
      %p42 = scmp.ne.s32.totalorder %s31, %s32
      %p43 = scmp.eq.s32.totalorder %s23, 0
      %p44 = por %p42, %p43
      %p45 = scmp.ne.s32.totalorder %s31, %s32
      %p46 = scmp.eq.s32.totalorder %s24, 3
      %p47 = por %p45, %p46
      %p49 = scmp.ne.s32.totalorder %s32, %s48
      %p50 = scmp.eq.s32.totalorder %s24, 0
      %p51 = por %p49, %p50
      %s53 = sadd.s32 %s52, 1
      %p56 = scmp.eq.s32.totalorder %s18, 3
      %p57 = scmp.ne.s32.totalorder %s52, %s54
      %p58 = scmp.eq.s32.totalorder %s18, 0
      %p59 = por %p57, %p58
      %p60 = scmp.ne.s32.totalorder %s52, %s54
      %p61 = scmp.eq.s32.totalorder %s23, 3
      %p62 = por %p60, %p61
      %p63 = scmp.ne.s32.totalorder %s54, %s55
      %p64 = scmp.eq.s32.totalorder %s23, 0
      %p65 = por %p63, %p64
      %p66 = scmp.ne.s32.totalorder %s54, %s55
      %p67 = scmp.eq.s32.totalorder %s24, 3
      %p68 = por %p66, %p67
      %p70 = scmp.ne.s32.totalorder %s55, %s69
      %p71 = scmp.eq.s32.totalorder %s24, 0
      %p72 = por %p70, %p71
      %s73 = ssub.s32 %s18, %s25
      %p74 = scmp.eq.s32.totalorder %s73, 0
      %s76 = sadd.s32 %s75, 1
      %s77 = scalar_select %p74, %s75, %s76
      %p80 = pneg %p74
      %p81 = scmp.eq.s32.totalorder %s18, 3
      %p82 = por %p80, %p81
      %p83 = scmp.ne.s32.totalorder %s75, %s78
      %p84 = scmp.eq.s32.totalorder %s18, 0
      %p85 = por %p83, %p84
      %p86 = scmp.ne.s32.totalorder %s75, %s78
      %p87 = scmp.eq.s32.totalorder %s23, 3
      %p88 = por %p86, %p87
      %p89 = scmp.ne.s32.totalorder %s78, %s79
      %p90 = scmp.eq.s32.totalorder %s23, 0
      %p91 = por %p89, %p90
      %p92 = scmp.ne.s32.totalorder %s78, %s79
      %p93 = scmp.eq.s32.totalorder %s24, 3
      %p94 = por %p92, %p93
      %p96 = scmp.ne.s32.totalorder %s79, %s95
      %p97 = scmp.eq.s32.totalorder %s24, 0
      %p98 = por %p96, %p97
      %p99 = scmp.le.s32.totalorder 1, %s18
      %p100 = scmp.lt.s32.totalorder %s18, 5
      %p101 = pnand %p99, %p100
      %p102 = pneg %p101
      // Predicated region
      $region9: #{tpu_custom_call.1} parent=5 // pred_check
        _
      $region10: #{tpu_custom_call.1} parent=5 // pred_check_branch
        %104 = sbr.rel (%p101) target = $region12
      $region11: #{tpu_custom_call.1} parent=5 // pred_region
        %s105 = ssub.s32 %s18, 1
        // Predicated region
        $region13: #{tpu_custom_call.1} parent=11 // pred_check
          %p106 = pneg %p65
        $region14: #{tpu_custom_call.1} parent=11 // pred_check_branch
          %108 = sbr.rel (%p106) target = $region16
        $region15: #{tpu_custom_call.1} parent=11 // pred_region
          _
        $region16: #{tpu_custom_call.1} parent=11 // pred_fallthru
          _
      $region12: #{tpu_custom_call.1} parent=5 // pred_fallthru
        _
      %p109 = scmp.lt.s32.totalorder %s18, 4
      // Predicated region
      $region17: #{tpu_custom_call.1} parent=5 // pred_check
        %p110 = pneg %p109
      $region18: #{tpu_custom_call.1} parent=5 // pred_check_branch
        %112 = sbr.rel (%p110) target = $region20
      $region19: #{tpu_custom_call.1} parent=5 // pred_region
        // Predicated region
        $region21: #{tpu_custom_call.1} parent=19 // pred_check
          %p113 = pneg %p38
        $region22: #{tpu_custom_call.1} parent=19 // pred_check_branch
          %115 = sbr.rel (%p113) target = $region24
        $region23: #{tpu_custom_call.1} parent=19 // pred_region
          %s116 = smul.u32 2, %s18
          %p117 = scmp.lt.s32.totalorder %s116, 7
          %s118 = scalar_select %p117, %s116, 7
          %s119 = smul.addr %s118, 8
          %s120 = scalar_lea.vmem %s1, %s119
          %s121 = smul.u32 2, %s18
        $region24: #{tpu_custom_call.1} parent=19 // pred_fallthru
          _
      $region20: #{tpu_custom_call.1} parent=5 // pred_fallthru
        _
      %p122 = scmp.le.s32.totalorder 1, %s18
      %p123 = scmp.lt.s32.totalorder %s18, 5
      %p124 = pnand %p122, %p123
      %p125 = pneg %p124
      // Predicated region
      $region25: #{tpu_custom_call.1} parent=5 // pred_check
        _
      $region26: #{tpu_custom_call.1} parent=5 // pred_check_branch
        %127 = sbr.rel (%p124) target = $region28
      $region27: #{tpu_custom_call.1} parent=5 // pred_region
        %s128 = ssub.s32 %s18, 1
        %s129 = smul.u32 2, %s23
        %p130 = scmp.lt.s32.totalorder %s129, 7
        %s131 = scalar_select %p130, %s129, 7
        %s132 = smul.addr %s131, 8
        %s133 = scalar_lea.vmem %s1, %s132
        %p134 = pneg %p44
        %p135 = pneg %p41
        %p136 = pneg %p65
        %p137 = pneg %p62
        %p138 = pneg %p91
        %p139 = pneg %p88
        %s140 = sand.u32 %s78, 1
        %s141 = scalar_lea.sflag [#allocation5], %s140
        %s142 = sand.u32 %s78, 1
        %s143 = smul.addr %s142, 16
        %s144 = scalar_lea.vmem [#allocation4], %s143
        %s145 = smul.u32 2, %s23
        %p146 = scmp.lt.s32.totalorder %s145, 7
        %s147 = scalar_select %p146, %s145, 7
        %s148 = smul.addr %s147, 8
        %s149 = scalar_lea.vmem %s1, %s148
        %s150 = smul.u32 2, %s23
        %s151 = smul.u32 2, %s23
        %v152 = vld [vmem:[%s149] sm:$0xff]
        %v153 = vld [vmem:[%s149 + $0x8] sm:$0xff]
        %v154 = vld [vmem:[%s2] sm:$0xff]
        %v155 = vld [vmem:[%s2 + $0x8] sm:$0xff]
        %v156 = vld [vmem:[%s2 + $0x10] sm:$0xff]
        %v157 = vld [vmem:[%s2 + $0x18] sm:$0x1]
        %v158 = vlaneseq
        %v159 = vand.u32 %v158, 127
        %s160 = sld [smem:[#allocation3]]
        %v161 = vstv %s160
        %v162 = vadd.s32 %v152, %v161
        %v163 = vadd.s32 %v153, %v161
        %164 = vset.pattern.permute.xlu0 0
        %165 = vperm.xlu0 %164, %v162
        %v166 = vpop.permute.xlu0 %165
        %167 = vset.pattern.permute.xlu0 0
        %168 = vperm.xlu0 %167, %v163
        %v169 = vpop.permute.xlu0 %168
        %vm170 = vcmp.eq.s32.totalorder %v159, %v166
        %vm171 = vcmp.eq.s32.totalorder %v159, %v169
        %v172 = vsel %vm170, 1, 0
        %v173 = vsel %vm171, 1, 0
        %v174 = vcvt.s32.f32 %v172
        %v175 = vcvt.s32.f32 %v173
        %vm176 = vcmask 203776
        %v178 = vsel %vm176, %v174, 0
        %v181 = vsel %vm176, %v175, 0
        %vm183 = vcmask 1040384
        %v185 = vsel %vm183, %v157, 0
        %187 = vmatprep.subr.mxu0 0.0
        %188 = vmatpush1.msra.mxu0 %v154
        %189 = vmatprep.subr.mxu0 0.0
        %190 = vmatpush1.msra.mxu0 %v155
        %191 = vmatprep.subr.mxu0 0.0
        %192 = vmatpush1.msra.mxu0 %v156
        %193 = vmatprep.subr.mxu0 0.0
        %194 = vmatpush1.msra.mxu0 %v185
        %195 = vmatprep.subr.mxu0 0.0
        %196 = vmatpush1.msra.mxu0 0.0
        %197 = vmatprep.subr.mxu0 0.0
        %198 = vmatpush1.msra.mxu0 0.0
        %199 = vmatprep.subr.mxu0 0.0
        %200 = vmatpush1.msra.mxu0 0.0
        %201 = vmatprep.subr.mxu0 0.0
        %202 = vmatpush1.msra.mxu0 0.0
        %203 = vmatprep.subr.mxu0 0.0
        %204 = vmatpush1.msra.mxu0 0.0
        %205 = vmatprep.subr.mxu0 0.0
        %206 = vmatpush1.msra.mxu0 0.0
        %207 = vmatprep.subr.mxu0 0.0
        %208 = vmatpush1.msra.mxu0 0.0
        %209 = vmatprep.subr.mxu0 0.0
        %210 = vmatpush1.msra.mxu0 0.0
        %211 = vmatprep.subr.mxu0 0.0
        %212 = vmatpush1.msra.mxu0 0.0
        %213 = vmatprep.subr.mxu0 0.0
        %214 = vmatpush1.msra.mxu0 0.0
        %215 = vmatprep.subr.mxu0 0.0
        %216 = vmatpush1.msra.mxu0 0.0
        %217 = vmatprep.subr.mxu0 0.0
        %218 = vmatpush1.msra.mxu0 0.0
        %219 = vmatprep.subr.mxu0 0.0
        %220 = vmatpush1.msra.mxu0 0.0
        %221 = vmatprep.subr.mxu0 0.0
        %222 = vmatpush1.msra.mxu0 0.0
        %223 = vmatprep.subr.mxu0 0.0
        %224 = vmatpush1.msra.mxu0 0.0
        %225 = vmatprep.subr.mxu0 0.0
        %226 = vmatpush1.msra.mxu0 0.0
        %227 = vmatprep.subr.mxu0 0.0
        %228 = vmatpush1.msra.mxu0 0.0
        %229 = vmatprep.subr.mxu0 0.0
        %230 = vmatpush1.msra.mxu0 0.0
        %231 = vmatprep.subr.mxu0 0.0
        %232 = vmatpush1.msra.mxu0 0.0
        %233 = vmatprep.subr.mxu0 0.0
        %234 = vmatpush1.msra.mxu0 0.0
        %235 = vmatprep.subr.mxu0 0.0
        %236 = vmatpush1.msra.mxu0 0.0
        %237 = vmatprep.subr.mxu0 0.0
        %238 = vmatpush1.msra.mxu0 0.0
        %239 = vmatprep.subr.mxu0 0.0
        %240 = vmatpush1.msra.mxu0 0.0
        %241 = vmatprep.subr.mxu0 0.0
        %242 = vmatpush1.msra.mxu0 0.0
        %243 = vmatprep.subr.mxu0 0.0
        %244 = vmatpush1.msra.mxu0 0.0
        %245 = vmatprep.subr.mxu0 0.0
        %246 = vmatpush1.msra.mxu0 0.0
        %247 = vmatprep.subr.mxu0 0.0
        %248 = vmatpush1.msra.mxu0 0.0
        %249 = vmatprep.subr.mxu0 0.0
        %250 = vmatpush1.msra.mxu0 0.0
        %251 = vmatprep.mubr.f32.mxu0 0.0
        %252 = vmatmul.mubr.f32.gmra.mrb[0].mxu0 %v178
        %v253 = vpop.f32.mrb[0].mxu0
        %v254 = vadd.f32 0.0, %v253
        %v255 = vpop.f32.mrb[0].mxu0
        %256 = vmatprep.mubr.f32.mxu0 0.0
        %257 = vmatmul.mubr.f32.gmra.mrb[0].mxu0 %v181
        %v258 = vpop.f32.mrb[0].mxu0
        %v259 = vadd.f32 0.0, %v258
        %v260 = vpop.f32.mrb[0].mxu0
        %261 = vdwg.mxu0
        %s262 = sld [smem:[#allocation3 + $0x1]]
        %v263 = vstv %s262
        %v264 = vadd.s32 %v152, %v263
        %v265 = vadd.s32 %v153, %v263
        %266 = vset.pattern.permute.xlu0 1
        %267 = vperm.xlu0 %266, %v264
        %v268 = vpop.permute.xlu0 %267
        %269 = vset.pattern.permute.xlu0 1
        %270 = vperm.xlu0 %269, %v265
        %v271 = vpop.permute.xlu0 %270
        %vm272 = vcmp.eq.s32.totalorder %v159, %v268
        %vm273 = vcmp.eq.s32.totalorder %v159, %v271
        %v274 = vsel %vm272, 1, 0
        %v275 = vsel %vm273, 1, 0
        %v276 = vcvt.s32.f32 %v274
        %v277 = vcvt.s32.f32 %v275
        %v279 = vsel %vm176, %v276, 0
        %v282 = vsel %vm176, %v277, 0
        %284 = vmatprep.subr.mxu0 0.0
        %285 = vmatpush1.msra.mxu0 %v154
        %286 = vmatprep.subr.mxu0 0.0
        %287 = vmatpush1.msra.mxu0 %v155
        %288 = vmatprep.subr.mxu0 0.0
        %289 = vmatpush1.msra.mxu0 %v156
        %290 = vmatprep.subr.mxu0 0.0
        %291 = vmatpush1.msra.mxu0 %v185
        %292 = vmatprep.subr.mxu0 0.0
        %293 = vmatpush1.msra.mxu0 0.0
        %294 = vmatprep.subr.mxu0 0.0
        %295 = vmatpush1.msra.mxu0 0.0
        %296 = vmatprep.subr.mxu0 0.0
        %297 = vmatpush1.msra.mxu0 0.0
        %298 = vmatprep.subr.mxu0 0.0
        %299 = vmatpush1.msra.mxu0 0.0
        %300 = vmatprep.subr.mxu0 0.0
        %301 = vmatpush1.msra.mxu0 0.0
        %302 = vmatprep.subr.mxu0 0.0
        %303 = vmatpush1.msra.mxu0 0.0
        %304 = vmatprep.subr.mxu0 0.0
        %305 = vmatpush1.msra.mxu0 0.0
        %306 = vmatprep.subr.mxu0 0.0
        %307 = vmatpush1.msra.mxu0 0.0
        %308 = vmatprep.subr.mxu0 0.0
        %309 = vmatpush1.msra.mxu0 0.0
        %310 = vmatprep.subr.mxu0 0.0
        %311 = vmatpush1.msra.mxu0 0.0
        %312 = vmatprep.subr.mxu0 0.0
        %313 = vmatpush1.msra.mxu0 0.0
        %314 = vmatprep.subr.mxu0 0.0
        %315 = vmatpush1.msra.mxu0 0.0
        %316 = vmatprep.subr.mxu0 0.0
        %317 = vmatpush1.msra.mxu0 0.0
        %318 = vmatprep.subr.mxu0 0.0
        %319 = vmatpush1.msra.mxu0 0.0
        %320 = vmatprep.subr.mxu0 0.0
        %321 = vmatpush1.msra.mxu0 0.0
        %322 = vmatprep.subr.mxu0 0.0
        %323 = vmatpush1.msra.mxu0 0.0
        %324 = vmatprep.subr.mxu0 0.0
        %325 = vmatpush1.msra.mxu0 0.0
        %326 = vmatprep.subr.mxu0 0.0
        %327 = vmatpush1.msra.mxu0 0.0
        %328 = vmatprep.subr.mxu0 0.0
        %329 = vmatpush1.msra.mxu0 0.0
        %330 = vmatprep.subr.mxu0 0.0
        %331 = vmatpush1.msra.mxu0 0.0
        %332 = vmatprep.subr.mxu0 0.0
        %333 = vmatpush1.msra.mxu0 0.0
        %334 = vmatprep.subr.mxu0 0.0
        %335 = vmatpush1.msra.mxu0 0.0
        %336 = vmatprep.subr.mxu0 0.0
        %337 = vmatpush1.msra.mxu0 0.0
        %338 = vmatprep.subr.mxu0 0.0
        %339 = vmatpush1.msra.mxu0 0.0
        %340 = vmatprep.subr.mxu0 0.0
        %341 = vmatpush1.msra.mxu0 0.0
        %342 = vmatprep.subr.mxu0 0.0
        %343 = vmatpush1.msra.mxu0 0.0
        %344 = vmatprep.subr.mxu0 0.0
        %345 = vmatpush1.msra.mxu0 0.0
        %346 = vmatprep.subr.mxu0 0.0
        %347 = vmatpush1.msra.mxu0 0.0
        %348 = vmatprep.mubr.f32.mxu0 0.0
        %349 = vmatmul.mubr.f32.gmra.mrb[0].mxu0 %v279
        %v350 = vpop.f32.mrb[0].mxu0
        %v351 = vadd.f32 0.0, %v350
        %v352 = vpop.f32.mrb[0].mxu0
        %353 = vmatprep.mubr.f32.mxu0 0.0
        %354 = vmatmul.mubr.f32.gmra.mrb[0].mxu0 %v282
        %v355 = vpop.f32.mrb[0].mxu0
        %v356 = vadd.f32 0.0, %v355
        %v357 = vpop.f32.mrb[0].mxu0
        %358 = vdwg.mxu0
        %s359 = sld [smem:[#allocation3 + $0x2]]
        %v360 = vstv %s359
        %v361 = vadd.s32 %v152, %v360
        %v362 = vadd.s32 %v153, %v360
        %363 = vset.pattern.permute.xlu0 2
        %364 = vperm.xlu0 %363, %v361
        %v365 = vpop.permute.xlu0 %364
        %366 = vset.pattern.permute.xlu0 2
        %367 = vperm.xlu0 %366, %v362
        %v368 = vpop.permute.xlu0 %367
        %vm369 = vcmp.eq.s32.totalorder %v159, %v365
        %vm370 = vcmp.eq.s32.totalorder %v159, %v368
        %v371 = vsel %vm369, 1, 0
        %v372 = vsel %vm370, 1, 0
        %v373 = vcvt.s32.f32 %v371
        %v374 = vcvt.s32.f32 %v372
        %v376 = vsel %vm176, %v373, 0
        %v379 = vsel %vm176, %v374, 0
        %381 = vmatprep.subr.mxu0 0.0
        %382 = vmatpush1.msra.mxu0 %v154
        %383 = vmatprep.subr.mxu0 0.0
        %384 = vmatpush1.msra.mxu0 %v155
        %385 = vmatprep.subr.mxu0 0.0
        %386 = vmatpush1.msra.mxu0 %v156
        %387 = vmatprep.subr.mxu0 0.0
        %388 = vmatpush1.msra.mxu0 %v185
        %389 = vmatprep.subr.mxu0 0.0
        %390 = vmatpush1.msra.mxu0 0.0
        %391 = vmatprep.subr.mxu0 0.0
        %392 = vmatpush1.msra.mxu0 0.0
        %393 = vmatprep.subr.mxu0 0.0
        %394 = vmatpush1.msra.mxu0 0.0
        %395 = vmatprep.subr.mxu0 0.0
        %396 = vmatpush1.msra.mxu0 0.0
        %397 = vmatprep.subr.mxu0 0.0
        %398 = vmatpush1.msra.mxu0 0.0
        %399 = vmatprep.subr.mxu0 0.0
        %400 = vmatpush1.msra.mxu0 0.0
        %401 = vmatprep.subr.mxu0 0.0
        %402 = vmatpush1.msra.mxu0 0.0
        %403 = vmatprep.subr.mxu0 0.0
        %404 = vmatpush1.msra.mxu0 0.0
        %405 = vmatprep.subr.mxu0 0.0
        %406 = vmatpush1.msra.mxu0 0.0
        %407 = vmatprep.subr.mxu0 0.0
        %408 = vmatpush1.msra.mxu0 0.0
        %409 = vmatprep.subr.mxu0 0.0
        %410 = vmatpush1.msra.mxu0 0.0
        %411 = vmatprep.subr.mxu0 0.0
        %412 = vmatpush1.msra.mxu0 0.0
        %413 = vmatprep.subr.mxu0 0.0
        %414 = vmatpush1.msra.mxu0 0.0
        %415 = vmatprep.subr.mxu0 0.0
        %416 = vmatpush1.msra.mxu0 0.0
        %417 = vmatprep.subr.mxu0 0.0
        %418 = vmatpush1.msra.mxu0 0.0
        %419 = vmatprep.subr.mxu0 0.0
        %420 = vmatpush1.msra.mxu0 0.0
        %421 = vmatprep.subr.mxu0 0.0
        %422 = vmatpush1.msra.mxu0 0.0
        %423 = vmatprep.subr.mxu0 0.0
        %424 = vmatpush1.msra.mxu0 0.0
        %425 = vmatprep.subr.mxu0 0.0
        %426 = vmatpush1.msra.mxu0 0.0
        %427 = vmatprep.subr.mxu0 0.0
        %428 = vmatpush1.msra.mxu0 0.0
        %429 = vmatprep.subr.mxu0 0.0
        %430 = vmatpush1.msra.mxu0 0.0
        %431 = vmatprep.subr.mxu0 0.0
        %432 = vmatpush1.msra.mxu0 0.0
        %433 = vmatprep.subr.mxu0 0.0
        %434 = vmatpush1.msra.mxu0 0.0
        %435 = vmatprep.subr.mxu0 0.0
        %436 = vmatpush1.msra.mxu0 0.0
        %437 = vmatprep.subr.mxu0 0.0
        %438 = vmatpush1.msra.mxu0 0.0
        %439 = vmatprep.subr.mxu0 0.0
        %440 = vmatpush1.msra.mxu0 0.0
        %441 = vmatprep.subr.mxu0 0.0
        %442 = vmatpush1.msra.mxu0 0.0
        %443 = vmatprep.subr.mxu0 0.0
        %444 = vmatpush1.msra.mxu0 0.0
        %445 = vmatprep.mubr.f32.mxu0 0.0
        %446 = vmatmul.mubr.f32.gmra.mrb[0].mxu0 %v376
        %v447 = vpop.f32.mrb[0].mxu0
        %v448 = vadd.f32 0.0, %v447
        %v449 = vpop.f32.mrb[0].mxu0
        %450 = vmatprep.mubr.f32.mxu0 0.0
        %451 = vmatmul.mubr.f32.gmra.mrb[0].mxu0 %v379
        %v452 = vpop.f32.mrb[0].mxu0
        %v453 = vadd.f32 0.0, %v452
        %v454 = vpop.f32.mrb[0].mxu0
        %455 = vdwg.mxu0
        %s456 = sld [smem:[#allocation3 + $0x3]]
        %v457 = vstv %s456
        %v458 = vadd.s32 %v152, %v457
        %v459 = vadd.s32 %v153, %v457
        %460 = vset.pattern.permute.xlu0 3
        %461 = vperm.xlu0 %460, %v458
        %v462 = vpop.permute.xlu0 %461
        %463 = vset.pattern.permute.xlu0 3
        %464 = vperm.xlu0 %463, %v459
        %v465 = vpop.permute.xlu0 %464
        %vm466 = vcmp.eq.s32.totalorder %v159, %v462
        %vm467 = vcmp.eq.s32.totalorder %v159, %v465
        %v468 = vsel %vm466, 1, 0
        %v469 = vsel %vm467, 1, 0
        %v470 = vcvt.s32.f32 %v468
        %v471 = vcvt.s32.f32 %v469
        %v473 = vsel %vm176, %v470, 0
        %v476 = vsel %vm176, %v471, 0
        %478 = vmatprep.subr.mxu0 0.0
        %479 = vmatpush1.msra.mxu0 %v154
        %480 = vmatprep.subr.mxu0 0.0
        %481 = vmatpush1.msra.mxu0 %v155
        %482 = vmatprep.subr.mxu0 0.0
        %483 = vmatpush1.msra.mxu0 %v156
        %484 = vmatprep.subr.mxu0 0.0
        %485 = vmatpush1.msra.mxu0 %v185
        %486 = vmatprep.subr.mxu0 0.0
        %487 = vmatpush1.msra.mxu0 0.0
        %488 = vmatprep.subr.mxu0 0.0
        %489 = vmatpush1.msra.mxu0 0.0
        %490 = vmatprep.subr.mxu0 0.0
        %491 = vmatpush1.msra.mxu0 0.0
        %492 = vmatprep.subr.mxu0 0.0
        %493 = vmatpush1.msra.mxu0 0.0
        %494 = vmatprep.subr.mxu0 0.0
        %495 = vmatpush1.msra.mxu0 0.0
        %496 = vmatprep.subr.mxu0 0.0
        %497 = vmatpush1.msra.mxu0 0.0
        %498 = vmatprep.subr.mxu0 0.0
        %499 = vmatpush1.msra.mxu0 0.0
        %500 = vmatprep.subr.mxu0 0.0
        %501 = vmatpush1.msra.mxu0 0.0
        %502 = vmatprep.subr.mxu0 0.0
        %503 = vmatpush1.msra.mxu0 0.0
        %504 = vmatprep.subr.mxu0 0.0
        %505 = vmatpush1.msra.mxu0 0.0
        %506 = vmatprep.subr.mxu0 0.0
        %507 = vmatpush1.msra.mxu0 0.0
        %508 = vmatprep.subr.mxu0 0.0
        %509 = vmatpush1.msra.mxu0 0.0
        %510 = vmatprep.subr.mxu0 0.0
        %511 = vmatpush1.msra.mxu0 0.0
        %512 = vmatprep.subr.mxu0 0.0
        %513 = vmatpush1.msra.mxu0 0.0
        %514 = vmatprep.subr.mxu0 0.0
        %515 = vmatpush1.msra.mxu0 0.0
        %516 = vmatprep.subr.mxu0 0.0
        %517 = vmatpush1.msra.mxu0 0.0
        %518 = vmatprep.subr.mxu0 0.0
        %519 = vmatpush1.msra.mxu0 0.0
        %520 = vmatprep.subr.mxu0 0.0
        %521 = vmatpush1.msra.mxu0 0.0
        %522 = vmatprep.subr.mxu0 0.0
        %523 = vmatpush1.msra.mxu0 0.0
        %524 = vmatprep.subr.mxu0 0.0
        %525 = vmatpush1.msra.mxu0 0.0
        %526 = vmatprep.subr.mxu0 0.0
        %527 = vmatpush1.msra.mxu0 0.0
        %528 = vmatprep.subr.mxu0 0.0
        %529 = vmatpush1.msra.mxu0 0.0
        %530 = vmatprep.subr.mxu0 0.0
        %531 = vmatpush1.msra.mxu0 0.0
        %532 = vmatprep.subr.mxu0 0.0
        %533 = vmatpush1.msra.mxu0 0.0
        %534 = vmatprep.subr.mxu0 0.0
        %535 = vmatpush1.msra.mxu0 0.0
        %536 = vmatprep.subr.mxu0 0.0
        %537 = vmatpush1.msra.mxu0 0.0
        %538 = vmatprep.subr.mxu0 0.0
        %539 = vmatpush1.msra.mxu0 0.0
        %540 = vmatprep.subr.mxu0 0.0
        %541 = vmatpush1.msra.mxu0 0.0
        %542 = vmatprep.mubr.f32.mxu0 0.0
        %543 = vmatmul.mubr.f32.gmra.mrb[0].mxu0 %v473
        %v544 = vpop.f32.mrb[0].mxu0
        %v545 = vadd.f32 0.0, %v544
        %v546 = vpop.f32.mrb[0].mxu0
        %547 = vmatprep.mubr.f32.mxu0 0.0
        %548 = vmatmul.mubr.f32.gmra.mrb[0].mxu0 %v476
        %v549 = vpop.f32.mrb[0].mxu0
        %v550 = vadd.f32 0.0, %v549
        %v551 = vpop.f32.mrb[0].mxu0
        %552 = vdwg.mxu0
        %555 = vrot.lane.b32.xlu0 %v351, 32
        %v556 = vpop.permute.xlu0 %555
        %557 = vrot.lane.b32.xlu0 %v356, 32
        %v558 = vpop.permute.xlu0 %557
        %563 = vrot.lane.b32.xlu0 %v448, 64
        %v564 = vpop.permute.xlu0 %563
        %565 = vrot.lane.b32.xlu0 %v453, 64
        %v566 = vpop.permute.xlu0 %565
        %571 = vrot.lane.b32.xlu0 %v545, 96
        %v572 = vpop.permute.xlu0 %571
        %573 = vrot.lane.b32.xlu0 %v550, 96
        %v574 = vpop.permute.xlu0 %573
        %vm577 = vcmask 261120
        %v578 = vsel %vm577, %v254, %v556
        %v579 = vsel %vm577, %v259, %v558
        %vm580 = vcmask 523264
        %v581 = vsel %vm580, %v578, %v564
        %v582 = vsel %vm580, %v579, %v566
        %vm583 = vcmask 785408
        %v584 = vsel %vm583, %v581, %v572
        %v585 = vsel %vm583, %v582, %v574
        %586 = vst [vmem:[%s144] sm:$0xff] %v584
        %587 = vst [vmem:[%s144 + $0x8] sm:$0xff] %v585
        %s588 = sand.u32 %s78, 1
        %s589 = scalar_lea.sflag [#allocation5], %s588
        %s590 = sand.u32 %s78, 1
        %s591 = smul.addr %s590, 16
        %s592 = scalar_lea.vmem [#allocation4], %s591
        // Predicated region
        $region29: #{tpu_custom_call.1} parent=27 // pred_check
          %p593 = pneg %p88
        $region30: #{tpu_custom_call.1} parent=27 // pred_check_branch
          %595 = sbr.rel (%p593) target = $region32
        $region31: #{tpu_custom_call.1} parent=27 // pred_region
          %s596 = smul.u32 2, %s23
          %s598 = ssub.s32 256, 256
          %599 = vsyncadd %s589, %s598
          %s600 = smul.addr %s596, 128
          %s601 = scalar_lea.hbm %s3, %s600
          %s602 = sshll.u32 %s592, 4
          %s603 = int_to_ptr.vmem [resolvable:$true] %s602
          %608 = dma.vmem_to_hbm [thread:$0]  %s603, 256, %s601, %s589, 128, 128, 8
        $region32: #{tpu_custom_call.1} parent=27 // pred_fallthru
          _
      $region28: #{tpu_custom_call.1} parent=5 // pred_fallthru
        _
      %p609 = scmp.le.s32.totalorder 2, %s18
      // Predicated region
      $region33: #{tpu_custom_call.1} parent=5 // pred_check
        %p610 = pneg %p609
      $region34: #{tpu_custom_call.1} parent=5 // pred_check_branch
        %612 = sbr.rel (%p610) target = $region36
      $region35: #{tpu_custom_call.1} parent=5 // pred_region
        %s613 = ssub.s32 %s18, 2
        // Predicated region
        $region37: #{tpu_custom_call.1} parent=35 // pred_check
          %p614 = pneg %p94
        $region38: #{tpu_custom_call.1} parent=35 // pred_check_branch
          %616 = sbr.rel (%p614) target = $region40
        $region39: #{tpu_custom_call.1} parent=35 // pred_region
          %s617 = sand.u32 %s79, 1
          %s618 = scalar_lea.sflag [#allocation5], %s617
          %s619 = sand.u32 %s79, 1
          %s620 = smul.addr %s619, 16
          %s621 = scalar_lea.vmem [#allocation4], %s620
          %622 = dma.done %s618, 256
        $region40: #{tpu_custom_call.1} parent=35 // pred_fallthru
          _
      $region36: #{tpu_custom_call.1} parent=5 // pred_fallthru
        _
    $region6: #{tpu_custom_call.1} parent=1 // loop_footer
      %s22 = sadd.s32 1, %s18
    $region7: #{tpu_custom_call.1} parent=1 // loop_footer_branch
      %17 = sbr.rel target = $region3
    $region8: #{tpu_custom_call.1} parent=1 // loop_exit
      _
    %623 = vsyncpa [#allocation5], 1
    %s624 = scalar_lea.sflag [#allocation5], 1
    %625 = vsyncpa %s624, 1

</llo_original>
